<compile_context>
chip_gen: v7x
topology: tpu7x:2x2x1
jax: 0.10.0
libtpu: 0.0.40
codegen_flags: <defaults>
</compile_context>

<pallas_src>
import math

import jax
import jax.numpy as jnp
from jax.experimental import pallas as pl
from jax.experimental.pallas import tpu as pltpu


# --------------------------------------------------------------------------
# Kernel
# --------------------------------------------------------------------------
def _pos_enc_kernel(table_ref, phase_ref, noise_ref, out_ref):
    """out[r, c] = sin( sum_j noise[r, j] * table[j, c] + phase[c] )

    table_ref : [g, W]  f32 ; row j is the frequency row masked to the j-th
                              dim-sized lane group (g == 1 -> unmasked row)
    phase_ref : [1, W]  f32 ; 0 on sin columns, pi/2 on cos columns
    noise_ref : [TB, g]
    out_ref   : [TB, W]     ; W = g * dim (multiple of 128 on the packed path)
    """
    g = noise_ref.shape[1]
    nz = noise_ref[...].astype(jnp.float32)      # [TB, g]
    enc = phase_ref[...]                         # [1, W], broadcasts below
    # Static unroll (g <= 16): each term is a column-broadcast multiply by a
    # trace-time constant row; masked rows make the terms disjoint per lane.
    for j in range(g):
        enc = enc + nz[:, j:j + 1] * table_ref[j:j + 1, :]
    out_ref[...] = jnp.sin(enc).astype(out_ref.dtype)


# --------------------------------------------------------------------------
# Tiling helpers
# --------------------------------------------------------------------------
def _round_up(x: int, m: int) -> int:
    return -(-x // m) * m


def _pick_rows_tile(rows: int, row_bytes: int, align: int) -> int:
    """Rows per grid step.

    Targets ~4 MiB output tiles (>=85% of HBM roofline in measured BlockSpec
    sweeps; 2x-buffered tiles stay far below v7x's 32 MiB scoped VMEM), while
    guaranteeing >= 2 grid steps whenever `rows` allows it, so that
    dimension_semantics=("parallel",) can shard across v7x's two TensorCores
    and writeback/prefetch overlap stays alive.
    """
    target_tile_bytes = 4 << 20
    tb = (target_tile_bytes // max(row_bytes, 1)) // align * align
    tb = max(align, tb)
    if tb >= rows:
        if rows >= 2 * align:
            tb = _round_up(_round_up(rows, 2) // 2, align)  # ~rows/2, aligned, < rows
        else:
            tb = rows                                       # tiny: one full-extent tile
    return tb


# --------------------------------------------------------------------------
# Reference / small-problem fallback (plain jnp, XLA-fused)
# --------------------------------------------------------------------------
def _jnp_positional_encoding(noise_level: jax.Array, dim: int) -> jax.Array:
    count = dim // 2
    step = jnp.arange(count, dtype=jnp.float32) / jnp.float32(count)
    enc = noise_level.astype(jnp.float32)[:, None] * jnp.exp(
        jnp.float32(-math.log(10000.0)) * step)[None, :]
    out = jnp.concatenate([jnp.sin(enc), jnp.cos(enc)], axis=-1)
    return out.astype(noise_level.dtype)


# --------------------------------------------------------------------------
# Wrapper
# --------------------------------------------------------------------------
def positional_encoding(noise_level: jax.Array, dim: int, *,
                        force_pallas: bool = False) -> jax.Array:
    """Pallas equivalent of PositionalEncoding(dim)(noise_level).

    noise_level: [B] float vector.   returns: [B, dim].
    """
    assert noise_level.ndim == 1, "noise_level must be a 1-D vector [B]"
    assert dim % 2 == 0, "dim must be even (sin/cos halves)"
    b = noise_level.shape[0]
    count = dim // 2
    out_dtype = noise_level.dtype
    itemsize = jnp.dtype(out_dtype).itemsize

    # Toy problems: pallas_call launch overhead dominates; let XLA fuse it.
    if not force_pallas and b * dim < (1 << 20):
        return _jnp_positional_encoding(noise_level, dim)

    # ---- trace-time constant tables (constant-folded under jit) ----
    step = jnp.arange(count, dtype=jnp.float32) / jnp.float32(count)
    freq = jnp.exp(jnp.float32(-math.log(10000.0)) * step)              # [count]
    freq_dim = jnp.concatenate([freq, freq])                            # [dim]
    phase_dim = jnp.concatenate(
        [jnp.zeros((count,), jnp.float32),
         jnp.full((count,), jnp.float32(math.pi / 2.0))])               # [dim]

    # ---- packing factor: lane-dense rows for small dim ----
    # Pack g consecutive batch elements per output row so the lane axis is a
    # multiple of 128; [B/g, g*dim] -> [B, dim] afterwards is a free
    # contiguous reshape (no extra HBM pass, unlike a transpose).
    if dim < 128 and 128 % dim == 0 and (128 // dim) <= 16 and b % (128 // dim) == 0:
        g = 128 // dim
    else:
        g = 1          # dim >= 128, or an awkward dim/batch: direct [B, dim]
    rows, width = b // g, g * dim

    freq_row = jnp.tile(freq_dim, g)                                    # [width]
    phase_row = jnp.tile(phase_dim, g).reshape(1, width)                # [1, width]
    col_group = (jnp.arange(width, dtype=jnp.int32) // dim)[None, :]    # [1, width]
    table = jnp.where(col_group == jnp.arange(g, dtype=jnp.int32)[:, None],
                      freq_row[None, :], jnp.float32(0.0))              # [g, width]

    # 2-byte dtypes tile as (16, 128): align the sublane (row) axis accordingly.
    align = 8 if itemsize >= 4 else 16
    tb = _pick_rows_tile(rows, width * itemsize, align)
    grid = (pl.cdiv(rows, tb),)

    # NOTE: a partial final row-tile reads padded/undefined noise rows and
    # computes sin() of garbage; those output rows are discarded by the
    # partial-tile writeback — benign by construction, do not "fix" with a mask.
    out = pl.pallas_call(
        _pos_enc_kernel,
        out_shape=jax.ShapeDtypeStruct((rows, width), out_dtype),
        grid=grid,
        in_specs=[
            pl.BlockSpec((g, width), lambda i: (0, 0)),     # freq table (resident)
            pl.BlockSpec((1, width), lambda i: (0, 0)),     # phase row  (resident)
            pl.BlockSpec((tb, g), lambda i: (i, 0)),        # noise rows
        ],
        out_specs=pl.BlockSpec((tb, width), lambda i: (i, 0)),
        compiler_params=pltpu.CompilerParams(
            dimension_semantics=("parallel",),
            vmem_limit_bytes=32 * 1024 * 1024),
        cost_estimate=pl.CostEstimate(
            flops=(2 * g + 1) * b * dim,
            transcendentals=b * dim,
            bytes_accessed=b * itemsize + b * dim * itemsize),
    )(table, phase_row, noise_level.reshape(rows, g))

    return out.reshape(b, dim)


# --------------------------------------------------------------------------
# Self-test
# --------------------------------------------------------------------------
if __name__ == "__main__":
    def _check(b, dim, seed, force_pallas):
        nl = jax.random.uniform(jax.random.PRNGKey(seed), (b,),
                                dtype=jnp.float32) * 10.0
        fn = jax.jit(lambda x: positional_encoding(x, dim,
                                                   force_pallas=force_pallas))
        out = jax.block_until_ready(fn(nl))
        ref = _jnp_positional_encoding(nl, dim)
        assert out.shape == (b, dim), (out.shape, (b, dim))
        assert jnp.allclose(out, ref, atol=1e-5, rtol=1e-5), \
            f"mismatch at b={b}, dim={dim}, force_pallas={force_pallas}"

    # Module-consistent toy shape: packed lane-dense kernel (dim=32 -> g=4).
    _check(8, 32, seed=0, force_pallas=True)
    # Same toy shape through the small-problem XLA-fused fallback.
    _check(8, 32, seed=0, force_pallas=False)
    # Wide dim: g=1, lane axis = 256 (multiple of 128, unmasked stores).
    _check(16, 256, seed=1, force_pallas=True)
    # Awkward dim (not a divisor of 128): g=1 direct path, single full-width store.
    _check(8, 48, seed=2, force_pallas=True)

    print("KERNEL_OK")
</pallas_src>

<mosaic_0001>
module attributes {stable_mosaic.version = 11 : i64} {
  func.func @_pos_enc_kernel(%arg0: i32, %arg1: memref<4x128xf32, #tpu.memory_space<vmem>>, %arg2: memref<1x128xf32, #tpu.memory_space<vmem>>, %arg3: memref<2x4xf32, #tpu.memory_space<vmem>>, %arg4: memref<2x128xf32, #tpu.memory_space<vmem>>) attributes {dimension_semantics = [#tpu.dimension_semantics<parallel>], iteration_bounds = array<i64: 1>, scalar_prefetch = 0 : i64, scratch_operands = 0 : i64, tpu.core_type = #tpu.core_type<tc>, window_params = [{pipeline_mode = #tpu.pipeline_mode<synchronous>, transform_indices = @transform_0, window_bounds = array<i64: 4, 128>}, {pipeline_mode = #tpu.pipeline_mode<synchronous>, transform_indices = @transform_1, window_bounds = array<i64: 1, 128>}, {transform_indices = @transform_2, window_bounds = array<i64: 2, 4>}, {transform_indices = @transform_3, window_bounds = array<i64: 2, 128>}]} {
    %c0 = arith.constant 0 : index
    %c0_0 = arith.constant 0 : index
    %0 = vector.load %arg3[%c0, %c0_0] : memref<2x4xf32, #tpu.memory_space<vmem>>, vector<2x4xf32>
    %c0_1 = arith.constant 0 : index
    %c0_2 = arith.constant 0 : index
    %1 = vector.load %arg2[%c0_1, %c0_2] : memref<1x128xf32, #tpu.memory_space<vmem>>, vector<1x128xf32>
    %2 = vector.extract_strided_slice %0 {offsets = [0, 0], sizes = [2, 1], strides = [1, 1]} : vector<2x4xf32> to vector<2x1xf32>
    %c0_3 = arith.constant 0 : index
    %c0_4 = arith.constant 0 : index
    %3 = vector.load %arg1[%c0_3, %c0_4] : memref<4x128xf32, #tpu.memory_space<vmem>>, vector<1x128xf32>
    %4 = vector.broadcast %2 : vector<2x1xf32> to vector<2x128xf32>
    %5 = vector.broadcast %3 : vector<1x128xf32> to vector<2x128xf32>
    %6 = arith.mulf %4, %5 : vector<2x128xf32>
    %7 = vector.broadcast %1 : vector<1x128xf32> to vector<2x128xf32>
    %8 = arith.addf %7, %6 : vector<2x128xf32>
    %9 = vector.extract_strided_slice %0 {offsets = [0, 1], sizes = [2, 1], strides = [1, 1]} : vector<2x4xf32> to vector<2x1xf32>
    %c1 = arith.constant 1 : index
    %c0_5 = arith.constant 0 : index
    %10 = vector.load %arg1[%c1, %c0_5] : memref<4x128xf32, #tpu.memory_space<vmem>>, vector<1x128xf32>
    %11 = vector.broadcast %9 : vector<2x1xf32> to vector<2x128xf32>
    %12 = vector.broadcast %10 : vector<1x128xf32> to vector<2x128xf32>
    %13 = arith.mulf %11, %12 : vector<2x128xf32>
    %14 = arith.addf %8, %13 : vector<2x128xf32>
    %15 = vector.extract_strided_slice %0 {offsets = [0, 2], sizes = [2, 1], strides = [1, 1]} : vector<2x4xf32> to vector<2x1xf32>
    %c2 = arith.constant 2 : index
    %c0_6 = arith.constant 0 : index
    %16 = vector.load %arg1[%c2, %c0_6] : memref<4x128xf32, #tpu.memory_space<vmem>>, vector<1x128xf32>
    %17 = vector.broadcast %15 : vector<2x1xf32> to vector<2x128xf32>
    %18 = vector.broadcast %16 : vector<1x128xf32> to vector<2x128xf32>
    %19 = arith.mulf %17, %18 : vector<2x128xf32>
    %20 = arith.addf %14, %19 : vector<2x128xf32>
    %21 = vector.extract_strided_slice %0 {offsets = [0, 3], sizes = [2, 1], strides = [1, 1]} : vector<2x4xf32> to vector<2x1xf32>
    %c3 = arith.constant 3 : index
    %c0_7 = arith.constant 0 : index
    %22 = vector.load %arg1[%c3, %c0_7] : memref<4x128xf32, #tpu.memory_space<vmem>>, vector<1x128xf32>
    %23 = vector.broadcast %21 : vector<2x1xf32> to vector<2x128xf32>
    %24 = vector.broadcast %22 : vector<1x128xf32> to vector<2x128xf32>
    %25 = arith.mulf %23, %24 : vector<2x128xf32>
    %26 = arith.addf %20, %25 : vector<2x128xf32>
    %27 = math.sin %26 : vector<2x128xf32>
    %c0_8 = arith.constant 0 : index
    %c0_9 = arith.constant 0 : index
    %28 = vector.load %arg4[%c0_8, %c0_9] : memref<2x128xf32, #tpu.memory_space<vmem>>, vector<2x128xf32>
    tpu.vector_store %arg4[%c0_8, %c0_9], %27 {strides = array<i32>} : memref<2x128xf32, #tpu.memory_space<vmem>>, vector<2x128xf32>,
    return
  }
  func.func @transform_0(%arg0: i32) -> (i32, i32) {
    %c0_i32 = arith.constant 0 : i32
    %c0_i32_0 = arith.constant 0 : i32
    %c0_i32_1 = arith.constant 0 : i32
    return %c0_i32, %c0_i32_0 : i32, i32
  }
  func.func @transform_1(%arg0: i32) -> (i32, i32) {
    %c0_i32 = arith.constant 0 : i32
    %c0_i32_0 = arith.constant 0 : i32
    %c0_i32_1 = arith.constant 0 : i32
    return %c0_i32, %c0_i32_0 : i32, i32
  }
  func.func @transform_2(%arg0: i32) -> (i32, i32) {
    %c0_i32 = arith.constant 0 : i32
    %c0_i32_0 = arith.constant 0 : i32
    return %arg0, %c0_i32 : i32, i32
  }
  func.func @transform_3(%arg0: i32) -> (i32, i32) {
    %c0_i32 = arith.constant 0 : i32
    %c0_i32_0 = arith.constant 0 : i32
    return %arg0, %c0_i32 : i32, i32
  }
}

</mosaic_0001>

<llo_original>
// kernel: tile.12
$region0: #{tile.12}
  #allocation0 [shape = 's32[1]{0}', space=sflag, size = 0x4, scoped, tag = 'scoped memory for tile.12']
  %s0 = inlined_call_operand.vmem [shape: f32[32], index: 0, kind: input, shape index: {}]
  %s1 = inlined_call_operand.vmem [shape: f32[4,32], index: 1, kind: output, shape index: {}]
  // Predicated region
  $region2: #{tile.12} parent=0 // pred_check
    _
  $region3: #{tile.12} parent=0 // pred_check_branch
    %3 = sbr.rel (0) target = $region5
  $region4: #{tile.12} parent=0 // pred_region
    _
  $region5: #{tile.12} parent=0 // pred_fallthru
    _
  %v4 = vld [vmem:[%s0] ss:$0 sm:$0xff]
  %5 = vst [vmem:[%s1] sm:$0xf] %v4

// kernel: tile.16
$region0: #{tile.16}
  %s0 = inlined_call_operand.vmem [shape: f32[4,32], index: 0, kind: input, shape index: {}]
  %s1 = inlined_call_operand.vmem [shape: f32[1,128], index: 1, kind: output, shape index: {}]
  $region1: #{tile.16} parent=0
    #allocation0 [shape = 'u8[4096]{0}', space=vmem, size = 0x1000, scoped, tag = 'scoped mem for output reshape']
    #allocation1 [shape = 'u8[4096]{0}', space=vmem, size = 0x1000, scoped, tag = 'scoped mem for input reshape']
    %s3 = sshllo.u32 0, 4
    %v4 = vld [vmem:[%s0] sm:%s3]
    %5 = vst [vmem:[#allocation1] sm:%s3] %v4
    %v6 = vld [vmem:[#allocation1] sm:$0x1]
    %vm7 = vcmask 261120
    %8 = vst.msk [vmem:[#allocation0] sm:$0x1] %vm7, %v6
    %s9 = scalar_lea.vmem [#allocation1], 3
    %v10 = vld [vmem:[%s9] sm:$0x1]
    %11 = vrot.lane.b32.xlu0 %v10, 96
    %v12 = vpop.permute.xlu0 %11
    %vm13 = vcmask 1048320
    %14 = vst.msk [vmem:[#allocation0] sm:$0x1] %vm13, %v12
    %s15 = scalar_lea.vmem [#allocation1], 2
    %v16 = vld [vmem:[%s15] sm:$0x1]
    %17 = vrot.lane.b32.xlu0 %v16, 64
    %v18 = vpop.permute.xlu0 %17
    %vm19 = vcmask 785920
    %20 = vst.msk [vmem:[#allocation0] sm:$0x1] %vm19, %v18
    %s21 = scalar_lea.vmem [#allocation1], 1
    %v22 = vld [vmem:[%s21] sm:$0x1]
    %23 = vrot.lane.b32.xlu0 %v22, 32
    %v24 = vpop.permute.xlu0 %23
    %vm25 = vcmask 523520
    %26 = vst.msk [vmem:[#allocation0] sm:$0x1] %vm25, %v24
    %s28 = sshllo.u32 0, 1
    %v30 = vld [vmem:[#allocation0] sm:%s28]
    %s31 = sshllo.u32 0, 1
    %32 = vst [vmem:[%s1] sm:%s31] %v30

// kernel: _lambda_.1
$region0: #{_lambda_.1}
  #allocation0 [shape = 'u32[]', space=smem, size = 0x4, offset = 0x4, fixed_abs, tag = 'smem constant byte address 0x4 - core index']
  #allocation1 [shape = 'u32[144,128]{1,0:T(1,128)}', space=vmem, size = 0x12000, scoped, tag = 'internal scratch']
  %s0 = inlined_call_operand.vmem [shape: f32[4,128], index: 0, kind: input, shape index: {}]
  %s1 = inlined_call_operand.vmem [shape: f32[1,128], index: 1, kind: input, shape index: {}]
  %s2 = inlined_call_operand.vmem [shape: f32[2,4], index: 2, kind: input, shape index: {}]
  %s3 = inlined_call_operand.vmem [shape: f32[2,128], index: 3, kind: output, shape index: {}]
  %s4 = sld [smem:[#allocation0]]
  $region22: #{_lambda_.1} parent=0
    _
  %s6 = ssub.s32 1, %s4
  %s7 = scalar_select 0, %s6, %s4
  // Predicated region
  $region2: #{_lambda_.1} parent=0 // pred_check
    _
  $region3: #{_lambda_.1} parent=0 // pred_check_branch
    %9 = sbr.rel (0) target = $region5
  $region4: #{_lambda_.1} parent=0 // pred_region
    _
  $region5: #{_lambda_.1} parent=0 // pred_fallthru
    _
  // Predicated region
  $region6: #{_lambda_.1} parent=0 // pred_check
    _
  $region7: #{_lambda_.1} parent=0 // pred_check_branch
    %11 = sbr.rel (0) target = $region9
  $region8: #{_lambda_.1} parent=0 // pred_region
    _
  $region9: #{_lambda_.1} parent=0 // pred_fallthru
    _
  // Predicated region
  $region10: #{_lambda_.1} parent=0 // pred_check
    _
  $region11: #{_lambda_.1} parent=0 // pred_check_branch
    %13 = sbr.rel (0) target = $region13
  $region12: #{_lambda_.1} parent=0 // pred_region
    _
  $region13: #{_lambda_.1} parent=0 // pred_fallthru
    _
  %v14 = vld [vmem:[%s2] sm:$0x3]
  %v15 = vld [vmem:[%s1] sm:$0x1]
  %v16 = vld [vmem:[%s0] sm:$0x1]
  %18 = vset.pattern.permute.xlu0 0
  %19 = vperm.xlu0 %18, %v14
  %v20 = vpop.permute.xlu0 %19
  %v22 = vlaneseq
  %v23 = vshrl.u32 %v22, 7
  %v24 = vsub.s32 0, %v23
  %v25 = vrot.slane %v16, %v24
  %v26 = vmul.f32 %v20, %v25
  %v28 = vlaneseq
  %v29 = vshrl.u32 %v28, 7
  %v30 = vsub.s32 0, %v29
  %v31 = vrot.slane %v15, %v30
  %v33 = vadd.f32 %v31, %v26
  %v34 = vld [vmem:[%s0 + $0x1] sm:$0x1]
  %35 = vset.pattern.permute.xlu0 1
  %36 = vperm.xlu0 %35, %v14
  %v37 = vpop.permute.xlu0 %36
  %v39 = vlaneseq
  %v40 = vshrl.u32 %v39, 7
  %v41 = vsub.s32 0, %v40
  %v42 = vrot.slane %v34, %v41
  %v43 = vmul.f32 %v37, %v42
  %v44 = vadd.f32 %v33, %v43
  %v45 = vld [vmem:[%s0 + $0x2] sm:$0x1]
  %46 = vset.pattern.permute.xlu0 2
  %47 = vperm.xlu0 %46, %v14
  %v48 = vpop.permute.xlu0 %47
  %v50 = vlaneseq
  %v51 = vshrl.u32 %v50, 7
  %v52 = vsub.s32 0, %v51
  %v53 = vrot.slane %v45, %v52
  %v54 = vmul.f32 %v48, %v53
  %v55 = vadd.f32 %v44, %v54
  %v56 = vld [vmem:[%s0 + $0x3] sm:$0x1]
  %57 = vset.pattern.permute.xlu0 3
  %58 = vperm.xlu0 %57, %v14
  %v59 = vpop.permute.xlu0 %58
  %v61 = vlaneseq
  %v62 = vshrl.u32 %v61, 7
  %v63 = vsub.s32 0, %v62
  %v64 = vrot.slane %v56, %v63
  %v65 = vmul.f32 %v59, %v64
  %v66 = vadd.f32 %v55, %v65
  %v67 = vand.u32 2147483647, %v66
  %vm68 = vcmp.le.f32.partialorder %v67, 0.7853982
  %vm69 = vcmp.lt.s32.totalorder %v66, 0
  %v70 = vand.u32 %v66, 2139095040
  %v71 = vshrl.u32 %v70, 23
  %v72 = vsub.s32 %v71, 127
  %v73 = vand.u32 2147483647, %v66
  %v74 = vand.u32 %v73, 8388607
  %v75 = vor.u32 %v74, 8388608
  %v76 = vsub.s32 0, %v75
  %v77 = vadd.s32 %v72, 1
  %vm78 = vcmp.gt.s32.totalorder %v77, 0
  %v79 = vsel %vm78, %v77, 0
  %v80 = vshrl.u32 %v79, 5
  %v81 = vand.u32 %v79, 31
  %v82 = vsub.s32 32, %v81
  %v83 = vshrl.u32 683565275, %v82
  %v84 = vshll.u32 683565275, %v81
  %v85 = vshrl.u32 2475754826, %v82
  %v86 = vor.u32 %v84, %v85
  %v87 = vshll.u32 2475754826, %v81
  %v88 = vshrl.u32 2131351028, %v82
  %v89 = vor.u32 %v87, %v88
  %v90 = vshll.u32 2131351028, %v81
  %v91 = vshrl.u32 2102212464, %v82
  %v92 = vor.u32 %v90, %v91
  %v93 = vshll.u32 2102212464, %v81
  %v94 = vshrl.u32 920167782, %v82
  %v95 = vor.u32 %v93, %v94
  %v96 = vshll.u32 920167782, %v81
  %v97 = vshrl.u32 1326507024, %v82
  %v98 = vor.u32 %v96, %v97
  %vm99 = vcmp.lt.s32.totalorder %v80, 1
  %vm100 = vcmp.lt.s32.totalorder %v80, 2
  %vm101 = vcmp.lt.s32.totalorder %v80, 3
  %vm102 = vcmp.lt.s32.totalorder %v80, 4
  %v103 = vsel %vm99, %v83, %v86
  %v104 = vsel %vm102, %v92, 2102212464
  %v105 = vsel %vm101, %v89, %v104
  %v106 = vsel %vm100, %v103, %v105
  %v107 = vsel %vm99, %v86, %v89
  %v108 = vsel %vm102, %v95, 920167782
  %v109 = vsel %vm101, %v92, %v108
  %v110 = vsel %vm100, %v107, %v109
  %v111 = vsel %vm99, %v89, %v92
  %v112 = vsel %vm102, %v98, 1326507024
  %v113 = vsel %vm101, %v95, %v112
  %v114 = vsel %vm100, %v111, %v113
  %v115 = vshll.u32 %v75, 8
  %v116 = vmul.u32.u64.compose %v115, %v114
  %v117 = vextract.low.u32 %v116
  %v118 = vextract.high.u32 %v116
  %v119 = vmul.u32.u64.compose %v115, %v110
  %v120 = vextract.low.u32 %v119
  %v121 = vextract.high.u32 %v119
  %v122 = vmul.u32 %v115, %v106
  %v123 = vadd.s32 %v118, %v120
  %vm124 = vc.u32 %v118, %v120
  %v125 = vadd.s32 %v121, 1
  %v126 = vsel %vm124, %v125, %v121
  %v127 = vadd.s32 %v122, %v126
  %v128 = vadd.s32 %v127, 536870912
  %v129 = vshrl.u32 %v128, 30
  %v130 = vshll.u32 %v129, 30
  %v131 = vsub.s32 %v127, %v130
  %vm132 = vcmp.lt.s32.totalorder %v131, 0
  %v133 = vsub.s32 0, %v131
  %v134 = vsel %vm132, %v133, %v131
  %v135 = vclz %v134
  %v136 = vsub.s32 %v135, 2
  %vm137 = vcmp.gt.s32.totalorder 0, %v136
  %v138 = vsel %vm137, 0, %v136
  %v139 = vsub.s32 32, %v138
  %v140 = vshll.u32 %v131, %v138
  %v141 = vshrl.u32 %v123, %v139
  %v142 = vor.u32 %v140, %v141
  %v143 = vsub.s32 4294967266, %v138
  %v144 = vadd.s32 %v143, 127
  %v145 = vshll.u32 %v144, 23
  %v146 = vor.u32 4788187, %v145
  %v147 = vand.u32 2147483647, %v146
  %v149 = vcvt.s32.f32 %v142
  %v150 = vmul.f32 %v149, %v147
  %v151 = vxor.u32 %v150, 2147483648
  %v152 = vsel %vm69, %v151, %v150
  %v153 = vsub.s32 4, %v129
  %v154 = vsel %vm69, %v153, %v129
  %v155 = vsel %vm68, %v66, %v152
  %v156 = vsel %vm68, 0, %v154
  %v157 = vcosq.f32.pop %v155
  %v158 = vsinq.f32.pop %v155
  %vm159 = vweird.f32 %v66
  %v160 = vadd.s32 %v156, 3
  %v161 = vand.u32 %v160, 3
  %vm162 = vcmp.lt.s32.totalorder %v161, 2
  %vm163 = vcmp.eq.s32.totalorder %v161, 0
  %v164 = vxor.u32 %v158, 2147483648
  %v165 = vsel %vm163, %v157, %v164
  %vm166 = vcmp.eq.s32.totalorder %v161, 2
  %v167 = vxor.u32 %v157, 2147483648
  %v168 = vsel %vm166, %v167, %v158
  %v169 = vsel %vm162, %v165, %v168
  %v170 = vsel %vm159, nan, %v169
  %171 = vst [vmem:[%s3] sm:$0x3] %v170
  // Predicated region
  $region14: #{_lambda_.1} parent=0 // pred_check
    _
  $region15: #{_lambda_.1} parent=0 // pred_check_branch
    %173 = sbr.rel (0) target = $region17
  $region16: #{_lambda_.1} parent=0 // pred_region
    _
  $region17: #{_lambda_.1} parent=0 // pred_fallthru
    _
  // Predicated region
  $region18: #{_lambda_.1} parent=0 // pred_check
    _
  $region19: #{_lambda_.1} parent=0 // pred_check_branch
    %175 = sbr.rel (0) target = $region21
  $region20: #{_lambda_.1} parent=0 // pred_region
    _
  $region21: #{_lambda_.1} parent=0 // pred_fallthru
    _

</llo_original>
